<compile_context>
chip_gen: v6e
topology: v6e:2x2x1
jax: 0.10.0
libtpu: 0.0.40
codegen_flags: <defaults>
</compile_context>

<pallas_src>
import functools

import jax
import jax.numpy as jnp
from jax import lax
from jax.experimental import pallas as pl
from jax.experimental.pallas import tpu as pltpu


_STATS_ROWS = 8          # stats slab: row0 = sum, row1 = sum of squares, rest unused


def _act(t):
    # Hardswish: x * relu6(x + 3) / 6
    return t * jnp.clip(t + 3.0, 0.0, 6.0) * (1.0 / 6.0)


# ----------------------------------------------------------------------------
# Kernel 1: one (batch, h-tile) block of cv1 as a single MXU contraction
#           + per-tile BN partials
# ----------------------------------------------------------------------------
def _cv1_matmul_stats_kernel(p_ref, w_ref, z_ref, st_ref):
    """p_ref: (1, TH, W, KD) f32 patches (== x for k=1,s=1); w_ref: (KD, C) bf16.
    z_ref: (1, TH, W, C) bf16 pre-BN cv1 output.
    st_ref: (8, C) f32 partials (row0 = sum, row1 = sum of squares)."""
    _, th, wd, kd = p_ref.shape
    c = w_ref.shape[1]
    p = p_ref[0].reshape(th * wd, kd).astype(jnp.bfloat16)
    z = jnp.dot(p, w_ref[...], preferred_element_type=jnp.float32)   # (TH*W, C) f32
    zb = z.astype(jnp.bfloat16)                 # bf16 intermediate (halves HBM traffic)
    z_ref[0] = zb.reshape(th, wd, c)
    zf = zb.astype(jnp.float32)                 # stats over the values downstream sees
    st_ref[0:1, :] = jnp.sum(zf, axis=0, keepdims=True)
    st_ref[1:2, :] = jnp.sum(zf * zf, axis=0, keepdims=True)


# ----------------------------------------------------------------------------
# Kernel 2: 5x5 depthwise conv on one (batch, h-tile) block (VPU FMAs),
#           fusing BN1+act of the input on the fly, + per-tile BN2 partials.
#           Zero padding comes from a zero-initialized VMEM scratch; the two
#           halo rows above/below the tile arrive as separate 2-row blocks.
# ----------------------------------------------------------------------------
def _dwconv_stats_kernel(mid_ref, top_ref, bot_ref, w_ref, sc1_ref, sh1_ref,
                         z2_ref, st_ref, ybuf, *, dk, th, wd, halo):
    ti = pl.program_id(1)
    n_t = pl.num_programs(1)
    c = w_ref.shape[1]
    pad = dk // 2

    sc1 = sc1_ref[...].reshape(1, 1, c)
    sh1 = sh1_ref[...].reshape(1, 1, c)

    def bn1_act(zblk):          # zblk: (rows, wd, c) bf16 -> activated y1 (f32)
        return _act(zblk.astype(jnp.float32) * sc1 + sh1)

    # zero halo frame == the conv's zero padding
    ybuf[...] = jnp.zeros_like(ybuf)
    ybuf[pad:pad + th, pad:pad + wd, :] = bn1_act(mid_ref[0])

    @pl.when(ti > 0)
    def _():
        ybuf[pad - halo:pad, pad:pad + wd, :] = bn1_act(top_ref[0])

    @pl.when(ti < n_t - 1)
    def _():
        ybuf[pad + th:pad + th + halo, pad:pad + wd, :] = bn1_act(bot_ref[0])

    y = ybuf[...]
    acc = jnp.zeros((th, wd, c), jnp.float32)
    for ih in range(dk):
        for iw in range(dk):
            tap = lax.slice(y, (ih, iw, 0), (ih + th, iw + wd, c))
            acc = acc + tap * w_ref[ih * dk + iw].reshape(1, 1, c)

    z2b = acc.astype(jnp.bfloat16)
    z2_ref[0] = z2b
    zf = z2b.astype(jnp.float32)
    st_ref[0:1, :] = jnp.sum(zf, axis=(0, 1)).reshape(1, c)
    st_ref[1:2, :] = jnp.sum(zf * zf, axis=(0, 1)).reshape(1, c)


# ----------------------------------------------------------------------------
# Kernel 3: fused BN-apply + Hardswish for both halves + channel concat,
#           written into disjoint channel halves of one output block.
# ----------------------------------------------------------------------------
def _finalize_concat_kernel(z1_ref, z2_ref, sc1_ref, sh1_ref, sc2_ref, sh2_ref,
                            o_ref):
    c = sc1_ref.shape[-1]
    y1 = _act(z1_ref[0].astype(jnp.float32) * sc1_ref[...].reshape(1, 1, c)
              + sh1_ref[...].reshape(1, 1, c))
    y2 = _act(z2_ref[0].astype(jnp.float32) * sc2_ref[...].reshape(1, 1, c)
              + sh2_ref[...].reshape(1, 1, c))
    o_ref[0] = jnp.concatenate([y1, y2], axis=-1)


# ----------------------------------------------------------------------------
# Wrapper-side glue (layout plumbing only)
# ----------------------------------------------------------------------------
def _pick_tile_h(h1, max_rows):
    """Divisor of h1 used as tile height.  Multi-tile requires an even tile
    (2-row halo indexing); prefers >=2 tiles so the grid pipelines / shards."""
    cap = min(h1, max(max_rows, 1))
    fallback = None
    for cand in range(cap, 0, -1):
        if h1 % cand:
            continue
        if h1 // cand == 1:                 # single tile: halo never used
            if fallback is None:
                fallback = cand
            continue
        if cand % 2 == 0:                   # multi-tile needs even tile height
            return cand
    return fallback if fallback is not None else h1


def _im2col_patches_nhwc(x_nhwc, k, s, pad):
    """(N, Ho, Wo, k*k*C) patches; for k=1 the input itself (no copy for s=1)."""
    n, h, w, c = x_nhwc.shape
    h_out = (h + 2 * pad - k) // s + 1
    w_out = (w + 2 * pad - k) // s + 1
    if k == 1 and pad == 0:
        if s == 1:
            return x_nhwc, h_out, w_out
        return x_nhwc[:, ::s, ::s, :], h_out, w_out
    # TODO(synk): for k>1 this im2col materializes k*k copies of x wrapper-side.
    xp = jnp.pad(x_nhwc, ((0, 0), (pad, pad), (pad, pad), (0, 0)))
    cols = []
    for ih in range(k):
        for iw in range(k):
            cols.append(lax.slice(
                xp, (0, ih, iw, 0),
                (n, ih + (h_out - 1) * s + 1, iw + (w_out - 1) * s + 1, c),
                (1, s, s, 1)))
    return jnp.concatenate(cols, axis=-1), h_out, w_out


def _folded_bn(total_sum, total_sq, count, gamma, beta, eps):
    mean = total_sum / count
    var = jnp.maximum(total_sq / count - mean * mean, 0.0)
    scale = gamma * lax.rsqrt(var + eps)
    shift = beta - mean * scale
    return (scale.reshape(1, -1).astype(jnp.float32),
            shift.reshape(1, -1).astype(jnp.float32))


def _vmem_limit_bytes():
    # generation-aware budget: v7x has 64 MiB physical VMEM, v5e/v6e 128 MiB
    cap = None
    try:
        cap = getattr(pltpu.get_tpu_info(), "vmem_capacity_bytes", None)
    except Exception:
        cap = None
    if not cap:
        cap = 64 * 1024 * 1024
    return int(min(max(cap * 3 // 4, 32 * 1024 * 1024), 96 * 1024 * 1024))


def ghost_conv_forward(x_nchw, w_cv1, w_cv2, g1, b1, g2, b2, *,
                       k=1, s=1, eps=1e-5):
    """GhostConv forward. x_nchw: (N, c1, H, W); w_cv1: (c_, c1, k, k);
    w_cv2: (c_, 1, 5, 5) depthwise; g*/b*: BN gamma/beta of shape (c_,)."""
    n = x_nchw.shape[0]
    c_hid = w_cv1.shape[0]
    dk = w_cv2.shape[2]                    # 5
    dpad = dk // 2
    pad1 = k // 2                          # autopad(k, None)

    cparams = pltpu.CompilerParams(
        dimension_semantics=("parallel", "parallel"),
        vmem_limit_bytes=_vmem_limit_bytes())

    # ---------------- cv1: (im2col) + one MXU contraction per tile ----------
    x_nhwc = jnp.transpose(x_nchw, (0, 2, 3, 1)).astype(jnp.float32)
    patches, h1, w1o = _im2col_patches_nhwc(x_nhwc, k, s, pad1)
    kd = patches.shape[-1]

    bytes_per_row = 4 * w1o * max(kd, 4 * c_hid) + 16
    max_rows = max((8 * 1024 * 1024) // bytes_per_row, 2)
    th = _pick_tile_h(h1, max_rows)
    n_th = h1 // th

    w1_mat = (jnp.transpose(w_cv1, (2, 3, 1, 0))
              .reshape(kd, c_hid).astype(jnp.bfloat16))

    def mid_map(b, t):
        return (b, t, 0, 0)

    z1, st1 = pl.pallas_call(
        _cv1_matmul_stats_kernel,
        grid=(n, n_th),
        in_specs=[
            pl.BlockSpec((1, th, w1o, kd), mid_map),
            pl.BlockSpec((kd, c_hid), lambda b, t: (0, 0)),
        ],
        out_specs=[
            pl.BlockSpec((1, th, w1o, c_hid), mid_map),
            pl.BlockSpec((_STATS_ROWS, c_hid), lambda b, t: (b * n_th + t, 0)),
        ],
        out_shape=[
            jax.ShapeDtypeStruct((n, h1, w1o, c_hid), jnp.bfloat16),
            jax.ShapeDtypeStruct((n * n_th * _STATS_ROWS, c_hid), jnp.float32),
        ],
        compiler_params=cparams,
    )(patches, w1_mat)

    st1 = st1.reshape(n * n_th, _STATS_ROWS, c_hid)
    count = float(n * h1 * w1o)
    # NOTE: E[x^2]-E[x]^2 in f32 can cancel for large means; fine at these scales.
    scale1, shift1 = _folded_bn(jnp.sum(st1[:, 0, :], axis=0),
                                jnp.sum(st1[:, 1, :], axis=0),
                                count, g1.astype(jnp.float32),
                                b1.astype(jnp.float32), eps)

    # ---------------- cv2: 5x5 depthwise conv (VPU), halo-tiled -------------
    halo = min(dpad, h1)
    hb = max(h1 // halo, 1)                # number of halo-row blocks along H
    tph = th // halo                       # halo blocks per tile (th even if n_th>1)

    def top_map(b, t):
        return (b, jnp.maximum(t * tph - 1, 0), 0, 0)

    def bot_map(b, t):
        return (b, jnp.minimum((t + 1) * tph, hb - 1), 0, 0)

    w2_taps = (jnp.transpose(w_cv2[:, 0, :, :], (1, 2, 0))
               .reshape(dk * dk, c_hid).astype(jnp.float32))

    dw_kernel = functools.partial(_dwconv_stats_kernel,
                                  dk=dk, th=th, wd=w1o, halo=halo)
    z2, st2 = pl.pallas_call(
        dw_kernel,
        grid=(n, n_th),
        in_specs=[
            pl.BlockSpec((1, th, w1o, c_hid), mid_map),
            pl.BlockSpec((1, halo, w1o, c_hid), top_map),
            pl.BlockSpec((1, halo, w1o, c_hid), bot_map),
            pl.BlockSpec((dk * dk, c_hid), lambda b, t: (0, 0)),
            pl.BlockSpec((1, c_hid), lambda b, t: (0, 0)),
            pl.BlockSpec((1, c_hid), lambda b, t: (0, 0)),
        ],
        out_specs=[
            pl.BlockSpec((1, th, w1o, c_hid), mid_map),
            pl.BlockSpec((_STATS_ROWS, c_hid), lambda b, t: (b * n_th + t, 0)),
        ],
        out_shape=[
            jax.ShapeDtypeStruct((n, h1, w1o, c_hid), jnp.bfloat16),
            jax.ShapeDtypeStruct((n * n_th * _STATS_ROWS, c_hid), jnp.float32),
        ],
        scratch_shapes=[pltpu.VMEM((th + 2 * dpad, w1o + 2 * dpad, c_hid),
                                   jnp.float32)],
        compiler_params=cparams,
    )(z1, z1, z1, w2_taps, scale1, shift1)

    st2 = st2.reshape(n * n_th, _STATS_ROWS, c_hid)
    scale2, shift2 = _folded_bn(jnp.sum(st2[:, 0, :], axis=0),
                                jnp.sum(st2[:, 1, :], axis=0),
                                count, g2.astype(jnp.float32),
                                b2.astype(jnp.float32), eps)

    # ---------------- fused BN-act for both halves + channel concat ---------
    out_nhwc = pl.pallas_call(
        _finalize_concat_kernel,
        grid=(n, n_th),
        in_specs=[
            pl.BlockSpec((1, th, w1o, c_hid), mid_map),
            pl.BlockSpec((1, th, w1o, c_hid), mid_map),
            pl.BlockSpec((1, c_hid), lambda b, t: (0, 0)),
            pl.BlockSpec((1, c_hid), lambda b, t: (0, 0)),
            pl.BlockSpec((1, c_hid), lambda b, t: (0, 0)),
            pl.BlockSpec((1, c_hid), lambda b, t: (0, 0)),
        ],
        out_specs=pl.BlockSpec((1, th, w1o, 2 * c_hid), mid_map),
        out_shape=jax.ShapeDtypeStruct((n, h1, w1o, 2 * c_hid), jnp.float32),
        compiler_params=cparams,
    )(z1, z2, scale1, shift1, scale2, shift2)

    return jnp.transpose(out_nhwc, (0, 3, 1, 2))


# ----------------------------------------------------------------------------
# Plain-JAX reference (for correctness checking)
# ----------------------------------------------------------------------------
def _ghost_conv_reference(x, w_cv1, w_cv2, g1, b1, g2, b2, *, k, s, eps,
                          emulate_kernel_precision=False):
    """emulate_kernel_precision=True mimics the kernel's bf16 cv1 MXU inputs
    and bf16 storage of the pre-BN intermediates (all other math f32)."""
    c_hid = w_cv1.shape[0]

    def conv(inp, wt, stride, pad, groups, cast_bf16_inputs):
        if cast_bf16_inputs:
            inp = inp.astype(jnp.bfloat16)
            wt = wt.astype(jnp.bfloat16)
        y = lax.conv_general_dilated(
            inp, wt, (stride, stride), [(pad, pad), (pad, pad)],
            dimension_numbers=("NCHW", "OIHW", "NCHW"),
            feature_group_count=groups,
            preferred_element_type=jnp.float32)
        if emulate_kernel_precision:
            y = y.astype(jnp.bfloat16).astype(jnp.float32)
        return y

    def bn_act(y, gamma, beta):
        mean = jnp.mean(y, axis=(0, 2, 3), keepdims=True)
        var = jnp.mean((y - mean) ** 2, axis=(0, 2, 3), keepdims=True)
        yn = (y - mean) * lax.rsqrt(var + eps) * gamma.reshape(1, -1, 1, 1) \
             + beta.reshape(1, -1, 1, 1)
        return _act(yn)

    x32 = x.astype(jnp.float32)
    z1 = conv(x32, w_cv1.astype(jnp.float32), s, k // 2, 1,
              cast_bf16_inputs=emulate_kernel_precision)
    y1 = bn_act(z1, g1, b1)
    z2 = conv(y1, w_cv2.astype(jnp.float32), 1, w_cv2.shape[2] // 2, c_hid,
              cast_bf16_inputs=False)
    y2 = bn_act(z2, g2, b2)
    return jnp.concatenate([y1, y2], axis=1)


if __name__ == "__main__":
    # GhostConv(c1=4, c2=8, k=1, s=1) on x: (2, 4, 16, 16)
    N, C1, H, W = 2, 4, 16, 16
    C2, K, S = 8, 1, 1
    C_ = C2 // 2

    key = jax.random.PRNGKey(0)
    k_x, k_w1, k_w2 = jax.random.split(key, 3)

    x = jax.random.normal(k_x, (N, C1, H, W), dtype=jnp.float32)

    # deterministic kaiming-uniform-like conv init (bias=False in YOLOv5 Conv)
    bound1 = 1.0 / (C1 * K * K) ** 0.5
    w_cv1 = jax.random.uniform(k_w1, (C_, C1, K, K),
                               minval=-bound1, maxval=bound1, dtype=jnp.float32)
    bound2 = 1.0 / (1 * 5 * 5) ** 0.5
    w_cv2 = jax.random.uniform(k_w2, (C_, 1, 5, 5),
                               minval=-bound2, maxval=bound2, dtype=jnp.float32)

    # fresh BatchNorm2d: gamma=1, beta=0
    g1 = jnp.ones((C_,), jnp.float32)
    b1 = jnp.zeros((C_,), jnp.float32)
    g2 = jnp.ones((C_,), jnp.float32)
    b2 = jnp.zeros((C_,), jnp.float32)

    out = ghost_conv_forward(x, w_cv1, w_cv2, g1, b1, g2, b2, k=K, s=S)
    out = jax.block_until_ready(out)
    assert out.shape == (N, C2, H, W), out.shape

    # Tight check vs a reference that mirrors the kernel's bf16 MXU inputs and
    # bf16-stored pre-BN intermediates (all other math f32).
    ref_q = _ghost_conv_reference(x, w_cv1, w_cv2, g1, b1, g2, b2,
                                  k=K, s=S, eps=1e-5,
                                  emulate_kernel_precision=True)
    err_q = float(jnp.max(jnp.abs(out - ref_q)))
    assert jnp.allclose(out, ref_q, atol=2e-2, rtol=2e-2), err_q

    # Looser check vs the full-f32 reference (bf16 intermediates per perf review).
    ref_f32 = _ghost_conv_reference(x, w_cv1, w_cv2, g1, b1, g2, b2,
                                    k=K, s=S, eps=1e-5,
                                    emulate_kernel_precision=False)
    err_f = float(jnp.max(jnp.abs(out - ref_f32)))
    assert jnp.allclose(out, ref_f32, atol=8e-2, rtol=8e-2), err_f

    print("KERNEL_OK")
</pallas_src>

<mosaic_0001>
module attributes {stable_mosaic.version = 11 : i64} {
  func.func @_cv1_matmul_stats_kernel(%arg0: i32, %arg1: i32, %arg2: memref<1x8x16x4xf32, #tpu.memory_space<vmem>>, %arg3: memref<4x4xbf16, #tpu.memory_space<vmem>>, %arg4: memref<1x8x16x4xbf16, #tpu.memory_space<vmem>>, %arg5: memref<8x4xf32, #tpu.memory_space<vmem>>) attributes {dimension_semantics = [#tpu.dimension_semantics<parallel>, #tpu.dimension_semantics<parallel>], iteration_bounds = array<i64: 2, 2>, scalar_prefetch = 0 : i64, scratch_operands = 0 : i64, tpu.core_type = #tpu.core_type<tc>, window_params = [{transform_indices = @transform_0, window_bounds = array<i64: 1, 8, 16, 4>}, {pipeline_mode = #tpu.pipeline_mode<synchronous>, transform_indices = @transform_1, window_bounds = array<i64: 4, 4>}, {transform_indices = @transform_2, window_bounds = array<i64: 1, 8, 16, 4>}, {transform_indices = @transform_3, window_bounds = array<i64: 8, 4>}]} {
    %c0 = arith.constant 0 : index
    %c0_0 = arith.constant 0 : index
    %c0_1 = arith.constant 0 : index
    %c0_2 = arith.constant 0 : index
    %0 = vector.load %arg2[%c0, %c0_0, %c0_1, %c0_2] : memref<1x8x16x4xf32, #tpu.memory_space<vmem>>, vector<1x8x16x4xf32>
    %1 = vector.shape_cast %0 : vector<1x8x16x4xf32> to vector<8x16x4xf32>
    %2 = vector.shape_cast %1 : vector<8x16x4xf32> to vector<128x4xf32>
    %3 = arith.truncf %2 : vector<128x4xf32> to vector<128x4xbf16>
    %c0_3 = arith.constant 0 : index
    %c0_4 = arith.constant 0 : index
    %4 = vector.load %arg3[%c0_3, %c0_4] : memref<4x4xbf16, #tpu.memory_space<vmem>>, vector<4x4xbf16>
    %cst = arith.constant dense<0.000000e+00> : vector<128x4xf32>
    %5 = tpu.matmul %3, %4, %cst {dimension_numbers = #tpu.dot_dimension_numbers<[1], [0], [0], [1], [0, 0, 1, 1], [], []>} : vector<128x4xbf16>, vector<4x4xbf16>, vector<128x4xf32> -> vector<128x4xf32>
    %6 = arith.truncf %5 : vector<128x4xf32> to vector<128x4xbf16>
    %7 = vector.shape_cast %6 : vector<128x4xbf16> to vector<8x16x4xbf16>
    %c0_5 = arith.constant 0 : index
    %c0_6 = arith.constant 0 : index
    %c0_7 = arith.constant 0 : index
    %c0_8 = arith.constant 0 : index
    %8 = vector.load %arg4[%c0_5, %c0_6, %c0_7, %c0_8] : memref<1x8x16x4xbf16, #tpu.memory_space<vmem>>, vector<1x8x16x4xbf16>
    %9 = vector.shape_cast %8 : vector<1x8x16x4xbf16> to vector<8x16x4xbf16>
    %10 = vector.shape_cast %7 : vector<8x16x4xbf16> to vector<1x8x16x4xbf16>
    tpu.vector_store %arg4[%c0_5, %c0_6, %c0_7, %c0_8], %10 {strides = array<i32>} : memref<1x8x16x4xbf16, #tpu.memory_space<vmem>>, vector<1x8x16x4xbf16>,
    %11 = arith.extf %6 : vector<128x4xbf16> to vector<128x4xf32>
    %cst_9 = arith.constant dense<0.000000e+00> : vector<4xf32>
    %12 = vector.multi_reduction <add>, %11, %cst_9 [0] : vector<128x4xf32> to vector<4xf32>
    %13 = vector.shape_cast %12 : vector<4xf32> to vector<1x4xf32>
    %c0_10 = arith.constant 0 : index
    %c0_11 = arith.constant 0 : index
    %14 = vector.load %arg5[%c0_10, %c0_11] : memref<8x4xf32, #tpu.memory_space<vmem>>, vector<1x4xf32>
    tpu.vector_store %arg5[%c0_10, %c0_11], %13 {strides = array<i32>} : memref<8x4xf32, #tpu.memory_space<vmem>>, vector<1x4xf32>,
    %15 = arith.mulf %11, %11 : vector<128x4xf32>
    %cst_12 = arith.constant dense<0.000000e+00> : vector<4xf32>
    %16 = vector.multi_reduction <add>, %15, %cst_12 [0] : vector<128x4xf32> to vector<4xf32>
    %17 = vector.shape_cast %16 : vector<4xf32> to vector<1x4xf32>
    %c1 = arith.constant 1 : index
    %c0_13 = arith.constant 0 : index
    %18 = vector.load %arg5[%c1, %c0_13] : memref<8x4xf32, #tpu.memory_space<vmem>>, vector<1x4xf32>
    tpu.vector_store %arg5[%c1, %c0_13], %17 {strides = array<i32>} : memref<8x4xf32, #tpu.memory_space<vmem>>, vector<1x4xf32>,
    return
  }
  func.func @transform_0(%arg0: i32, %arg1: i32) -> (i32, i32, i32, i32) {
    %c0_i32 = arith.constant 0 : i32
    %c0_i32_0 = arith.constant 0 : i32
    %c0_i32_1 = arith.constant 0 : i32
    return %arg0, %arg1, %c0_i32, %c0_i32_0 : i32, i32, i32, i32
  }
  func.func @transform_1(%arg0: i32, %arg1: i32) -> (i32, i32) {
    %c0_i32 = arith.constant 0 : i32
    %c0_i32_0 = arith.constant 0 : i32
    %c0_i32_1 = arith.constant 0 : i32
    return %c0_i32, %c0_i32_0 : i32, i32
  }
  func.func @transform_2(%arg0: i32, %arg1: i32) -> (i32, i32, i32, i32) {
    %c0_i32 = arith.constant 0 : i32
    %c0_i32_0 = arith.constant 0 : i32
    %c0_i32_1 = arith.constant 0 : i32
    return %arg0, %arg1, %c0_i32, %c0_i32_0 : i32, i32, i32, i32
  }
  func.func @transform_3(%arg0: i32, %arg1: i32) -> (i32, i32) {
    %c2_i32 = arith.constant 2 : i32
    %0 = arith.muli %arg0, %c2_i32 : i32
    %1 = arith.addi %0, %arg1 : i32
    %c0_i32 = arith.constant 0 : i32
    %c0_i32_0 = arith.constant 0 : i32
    return %1, %c0_i32 : i32, i32
  }
}

</mosaic_0001>

<llo_original>
// kernel: tpu_custom_call.1
$region0: #{tpu_custom_call.1}
  #allocation0 [shape = 'u32[]', space=smem, size = 0x4, offset = 0x4, fixed_abs, tag = 'smem constant byte address 0x4 - core index']
  #allocation1 [shape = 'u32[144,128]{1,0:T(1,128)}', space=vmem, size = 0x12000, scoped, tag = 'internal scratch']
  %s0 = inlined_call_operand.vmem [shape: f32[2,16,16,4], index: 0, kind: input, shape index: {}]
  %s1 = inlined_call_operand.vmem [shape: bf16[4,4], index: 1, kind: input, shape index: {}]
  %s2 = inlined_call_operand.vmem [shape: bf16[2,16,16,4], index: 2, kind: output, shape index: {0}]
  %s3 = inlined_call_operand.vmem [shape: f32[32,4], index: 3, kind: output, shape index: {1}]
  %4 = xla_tuple %s2, %s3
  %s5 = sld [smem:[#allocation0]]
  $region49: #{tpu_custom_call.1} parent=0
    _
  %s7 = ssub.s32 1, %s5
  %s8 = scalar_select 0, %s7, %s5
  loop: start=0, step=1, limit=6
  $region2: #{tpu_custom_call.1} parent=0 // loop_pre_header
    _
  $region3: #{tpu_custom_call.1} parent=0 // loop_header
    %s10 = sphi 0, %s14
    %p11 = scmp.ge.s32.totalorder %s10, 6
    %s17 = sphi 0, %s29
    %s18 = sphi 0, %s25
    %s19 = sphi 0, %s17
    %s20 = sphi 0, %s18
    %s21 = sphi 0, %s19
    %s22 = sphi 0, %s20
    %s34 = sphi 0, %s36
    %s37 = sphi 0, %s34
    %s38 = sphi 0, %s37
    %s54 = sphi 0, %s38
    %s58 = sphi 0, %s58
    %s60 = sphi 0, %s58
    %s61 = sphi 0, %s60
    %s75 = sphi 0, %s61
    %s83 = sphi 0, %s85
    %s86 = sphi 0, %s83
    %s87 = sphi 0, %s86
    %s103 = sphi 0, %s87
    %s113 = sphi 0, %s115
    %s116 = sphi 0, %s113
    %s117 = sphi 0, %s116
    %s133 = sphi 0, %s117
  $region4: #{tpu_custom_call.1} parent=0 // loop_header_branch
    %13 = sbr.rel (%p11) target = $region8
  $region5: #{tpu_custom_call.1} parent=0 // loop_body
    %s15 = ssub.s32 %s10, 1
    %s16 = ssub.s32 %s10, 2
    %s23 = sadd.s32 1, %s18
    %p24 = scmp.ge.s32.totalorder %s23, 2
    %s25 = scalar_select %p24, 0, %s23
    %s26 = sadd.s32 1, %s17
    %s27 = scalar_select %p24, %s26, %s17
    %p28 = scmp.ge.s32.totalorder %s27, 2
    %s29 = scalar_select %p28, 0, %s27
    %s30 = ssub.s32 %s17, %s29
    %s31 = ssub.s32 %s18, %s25
    %s32 = sor.u32 %s30, %s31
    %p33 = scmp.eq.s32.totalorder %s32, 0
    %s35 = sadd.s32 %s34, 1
    %s36 = scalar_select %p33, %s34, %s35
    %p39 = pneg %p33
    %p40 = scmp.eq.s32.totalorder %s10, 3
    %p41 = por %p39, %p40
    %p42 = scmp.ne.s32.totalorder %s34, %s37
    %p43 = scmp.eq.s32.totalorder %s10, 0
    %p44 = por %p42, %p43
    %p45 = scmp.ne.s32.totalorder %s34, %s37
    %p46 = scmp.eq.s32.totalorder %s15, 3
    %p47 = por %p45, %p46
    %p48 = scmp.ne.s32.totalorder %s37, %s38
    %p49 = scmp.eq.s32.totalorder %s15, 0
    %p50 = por %p48, %p49
    %p51 = scmp.ne.s32.totalorder %s37, %s38
    %p52 = scmp.eq.s32.totalorder %s16, 3
    %p53 = por %p51, %p52
    %p55 = scmp.ne.s32.totalorder %s38, %s54
    %p56 = scmp.eq.s32.totalorder %s16, 0
    %p57 = por %p55, %p56
    %s59 = sadd.s32 %s58, 1
    %p62 = scmp.eq.s32.totalorder %s10, 3
    %p63 = scmp.ne.s32.totalorder %s58, %s60
    %p64 = scmp.eq.s32.totalorder %s10, 0
    %p65 = por %p63, %p64
    %p66 = scmp.ne.s32.totalorder %s58, %s60
    %p67 = scmp.eq.s32.totalorder %s15, 3
    %p68 = por %p66, %p67
    %p69 = scmp.ne.s32.totalorder %s60, %s61
    %p70 = scmp.eq.s32.totalorder %s15, 0
    %p71 = por %p69, %p70
    %p72 = scmp.ne.s32.totalorder %s60, %s61
    %p73 = scmp.eq.s32.totalorder %s16, 3
    %p74 = por %p72, %p73
    %p76 = scmp.ne.s32.totalorder %s61, %s75
    %p77 = scmp.eq.s32.totalorder %s16, 0
    %p78 = por %p76, %p77
    %s79 = ssub.s32 %s17, %s29
    %s80 = ssub.s32 %s18, %s25
    %s81 = sor.u32 %s79, %s80
    %p82 = scmp.eq.s32.totalorder %s81, 0
    %s84 = sadd.s32 %s83, 1
    %s85 = scalar_select %p82, %s83, %s84
    %p88 = pneg %p82
    %p89 = scmp.eq.s32.totalorder %s10, 3
    %p90 = por %p88, %p89
    %p91 = scmp.ne.s32.totalorder %s83, %s86
    %p92 = scmp.eq.s32.totalorder %s10, 0
    %p93 = por %p91, %p92
    %p94 = scmp.ne.s32.totalorder %s83, %s86
    %p95 = scmp.eq.s32.totalorder %s15, 3
    %p96 = por %p94, %p95
    %p97 = scmp.ne.s32.totalorder %s86, %s87
    %p98 = scmp.eq.s32.totalorder %s15, 0
    %p99 = por %p97, %p98
    %p100 = scmp.ne.s32.totalorder %s86, %s87
    %p101 = scmp.eq.s32.totalorder %s16, 3
    %p102 = por %p100, %p101
    %p104 = scmp.ne.s32.totalorder %s87, %s103
    %p105 = scmp.eq.s32.totalorder %s16, 0
    %p106 = por %p104, %p105
    %s107 = smul.u32 %s17, 2
    %s108 = sadd.s32 %s107, %s18
    %s109 = smul.u32 %s29, 2
    %s110 = sadd.s32 %s109, %s25
    %s111 = ssub.s32 %s108, %s110
    %p112 = scmp.eq.s32.totalorder %s111, 0
    %s114 = sadd.s32 %s113, 1
    %s115 = scalar_select %p112, %s113, %s114
    %p118 = pneg %p112
    %p119 = scmp.eq.s32.totalorder %s10, 3
    %p120 = por %p118, %p119
    %p121 = scmp.ne.s32.totalorder %s113, %s116
    %p122 = scmp.eq.s32.totalorder %s10, 0
    %p123 = por %p121, %p122
    %p124 = scmp.ne.s32.totalorder %s113, %s116
    %p125 = scmp.eq.s32.totalorder %s15, 3
    %p126 = por %p124, %p125
    %p127 = scmp.ne.s32.totalorder %s116, %s117
    %p128 = scmp.eq.s32.totalorder %s15, 0
    %p129 = por %p127, %p128
    %p130 = scmp.ne.s32.totalorder %s116, %s117
    %p131 = scmp.eq.s32.totalorder %s16, 3
    %p132 = por %p130, %p131
    %p134 = scmp.ne.s32.totalorder %s117, %s133
    %p135 = scmp.eq.s32.totalorder %s16, 0
    %p136 = por %p134, %p135
    %p137 = scmp.le.s32.totalorder 1, %s10
    %p138 = scmp.lt.s32.totalorder %s10, 5
    %p139 = pnand %p137, %p138
    %p140 = pneg %p139
    // Predicated region
    $region9: #{tpu_custom_call.1} parent=5 // pred_check
      _
    $region10: #{tpu_custom_call.1} parent=5 // pred_check_branch
      %142 = sbr.rel (%p139) target = $region12
    $region11: #{tpu_custom_call.1} parent=5 // pred_region
      %s143 = ssub.s32 %s10, 1
      // Predicated region
      $region13: #{tpu_custom_call.1} parent=11 // pred_check
        %p144 = pneg %p71
      $region14: #{tpu_custom_call.1} parent=11 // pred_check_branch
        %146 = sbr.rel (%p144) target = $region16
      $region15: #{tpu_custom_call.1} parent=11 // pred_region
        _
      $region16: #{tpu_custom_call.1} parent=11 // pred_fallthru
        _
    $region12: #{tpu_custom_call.1} parent=5 // pred_fallthru
      _
    %p147 = scmp.lt.s32.totalorder %s10, 4
    // Predicated region
    $region17: #{tpu_custom_call.1} parent=5 // pred_check
      %p148 = pneg %p147
    $region18: #{tpu_custom_call.1} parent=5 // pred_check_branch
      %150 = sbr.rel (%p148) target = $region20
    $region19: #{tpu_custom_call.1} parent=5 // pred_region
      // Predicated region
      $region21: #{tpu_custom_call.1} parent=19 // pred_check
        %p151 = pneg %p44
      $region22: #{tpu_custom_call.1} parent=19 // pred_check_branch
        %153 = sbr.rel (%p151) target = $region24
      $region23: #{tpu_custom_call.1} parent=19 // pred_region
        %s154 = smul.u32 8, %s18
        %p155 = scmp.lt.s32.totalorder %s17, 1
        %s156 = scalar_select %p155, %s17, 1
        %p157 = scmp.lt.s32.totalorder %s154, 15
        %s158 = scalar_select %p157, %s154, 15
        %s159 = smul.addr %s158, 2
        %s160 = smul.addr %s156, 32
        %s161 = sadd.s32 %s159, %s160
        %s162 = smul.addr %s161, 8
        %s163 = scalar_lea.vmem %s0, %s162
        %s164 = smul.u32 8, %s18
      $region24: #{tpu_custom_call.1} parent=19 // pred_fallthru
        _
    $region20: #{tpu_custom_call.1} parent=5 // pred_fallthru
      _
    %p165 = scmp.le.s32.totalorder 1, %s10
    %p166 = scmp.lt.s32.totalorder %s10, 5
    %p167 = pnand %p165, %p166
    %p168 = pneg %p167
    // Predicated region
    $region25: #{tpu_custom_call.1} parent=5 // pred_check
      _
    $region26: #{tpu_custom_call.1} parent=5 // pred_check_branch
      %170 = sbr.rel (%p167) target = $region28
    $region27: #{tpu_custom_call.1} parent=5 // pred_region
      %s171 = ssub.s32 %s10, 1
      %s172 = smul.u32 8, %s20
      %p173 = scmp.lt.s32.totalorder %s19, 1
      %s174 = scalar_select %p173, %s19, 1
      %p175 = scmp.lt.s32.totalorder %s172, 15
      %s176 = scalar_select %p175, %s172, 15
      %s177 = smul.addr %s176, 2
      %s178 = smul.addr %s174, 32
      %s179 = sadd.s32 %s177, %s178
      %s180 = smul.addr %s179, 8
      %s181 = scalar_lea.vmem %s0, %s180
      %p182 = pneg %p50
      %p183 = pneg %p47
      %p184 = pneg %p71
      %p185 = pneg %p68
      %p186 = pneg %p99
      %p187 = pneg %p96
      %s188 = smul.u32 8, %s20
      %p189 = scmp.lt.s32.totalorder %s19, 1
      %s190 = scalar_select %p189, %s19, 1
      %p191 = scmp.lt.s32.totalorder %s188, 15
      %s192 = scalar_select %p191, %s188, 15
      %s193 = smul.addr %s192, 2
      %s194 = smul.addr %s190, 32
      %s195 = sadd.s32 %s193, %s194
      %s196 = smul.addr %s195, 4
      %s197 = scalar_lea.vmem %s2, %s196
      %p198 = pneg %p129
      %p199 = pneg %p126
      %s200 = smul.u32 %s19, 2
      %s201 = sadd.s32 %s200, %s20
      %p202 = scmp.lt.s32.totalorder %s201, 3
      %s203 = scalar_select %p202, %s201, 3
      %s204 = smul.addr %s203, 8
      %s205 = scalar_lea.vmem %s3, %s204
      %s206 = smul.u32 8, %s20
      %p207 = scmp.lt.s32.totalorder %s19, 1
      %s208 = scalar_select %p207, %s19, 1
      %p209 = scmp.lt.s32.totalorder %s206, 15
      %s210 = scalar_select %p209, %s206, 15
      %s211 = smul.addr %s210, 2
      %s212 = smul.addr %s208, 32
      %s213 = sadd.s32 %s211, %s212
      %s214 = smul.addr %s213, 8
      %s215 = scalar_lea.vmem %s0, %s214
      %s216 = smul.u32 8, %s20
      %s217 = smul.u32 8, %s20
      %p218 = scmp.lt.s32.totalorder %s19, 1
      %s219 = scalar_select %p218, %s19, 1
      %p220 = scmp.lt.s32.totalorder %s217, 15
      %s221 = scalar_select %p220, %s217, 15
      %s222 = smul.addr %s221, 2
      %s223 = smul.addr %s219, 32
      %s224 = sadd.s32 %s222, %s223
      %s225 = smul.addr %s224, 4
      %s226 = scalar_lea.vmem %s2, %s225
      %s227 = smul.u32 8, %s20
      %s228 = smul.u32 %s19, 2
      %s229 = sadd.s32 %s228, %s20
      %p230 = scmp.lt.s32.totalorder %s229, 3
      %s231 = scalar_select %p230, %s229, 3
      %s232 = smul.addr %s231, 8
      %s233 = scalar_lea.vmem %s3, %s232
      %s234 = smul.u32 %s19, 2
      %s235 = sadd.s32 %s234, %s20
      %v237 = vld [vmem:[%s215] sm:$0xff]
      %v238 = vld [vmem:[%s215 + $0x8] sm:$0xff]
      %v239 = vld [vmem:[%s215 + $0x10] sm:$0xff]
      %v240 = vld [vmem:[%s215 + $0x18] sm:$0xff]
      %v241 = vld [vmem:[%s215 + $0x20] sm:$0xff]
      %v242 = vld [vmem:[%s215 + $0x28] sm:$0xff]
      %v243 = vld [vmem:[%s215 + $0x30] sm:$0xff]
      %v244 = vld [vmem:[%s215 + $0x38] sm:$0xff]
      %v245 = vld [vmem:[%s215 + $0x40] sm:$0xff]
      %v246 = vld [vmem:[%s215 + $0x48] sm:$0xff]
      %v247 = vld [vmem:[%s215 + $0x50] sm:$0xff]
      %v248 = vld [vmem:[%s215 + $0x58] sm:$0xff]
      %v249 = vld [vmem:[%s215 + $0x60] sm:$0xff]
      %v250 = vld [vmem:[%s215 + $0x68] sm:$0xff]
      %v251 = vld [vmem:[%s215 + $0x70] sm:$0xff]
      %v252 = vld [vmem:[%s215 + $0x78] sm:$0xff]
      %v253 = vpack.c.bf16 %v238, %v237
      %v254 = vpack.c.bf16 %v240, %v239
      %v255 = vpack.c.bf16 %v242, %v241
      %v256 = vpack.c.bf16 %v244, %v243
      %v257 = vpack.c.bf16 %v246, %v245
      %v258 = vpack.c.bf16 %v248, %v247
      %v259 = vpack.c.bf16 %v250, %v249
      %v260 = vpack.c.bf16 %v252, %v251
      %v261 = vld [vmem:[%s1] sm:$0x3]
      %vm262 = vcmask 31744
      %v264 = vsel %vm262, %v253, 0
      %v267 = vsel %vm262, %v254, 0
      %v270 = vsel %vm262, %v255, 0
      %v273 = vsel %vm262, %v256, 0
      %v276 = vsel %vm262, %v257, 0
      %v279 = vsel %vm262, %v258, 0
      %v282 = vsel %vm262, %v259, 0
      %v285 = vsel %vm262, %v260, 0
      %vm287 = vcmask 1041408
      %v289 = vsel %vm287, %v261, 0
      %291 = vmatprep.subr.bf16.mxu0 0
      %292 = vmatpush1.bf16.msra.mxu0 0
      %293 = vmatprep.subr.bf16.mxu0 0
      %294 = vmatpush1.bf16.msra.mxu0 0
      %295 = vmatprep.subr.bf16.mxu0 0
      %296 = vmatpush1.bf16.msra.mxu0 0
      %297 = vmatprep.subr.bf16.mxu0 0
      %298 = vmatpush1.bf16.msra.mxu0 0
      %299 = vmatprep.subr.bf16.mxu0 0
      %300 = vmatpush1.bf16.msra.mxu0 0
      %301 = vmatprep.subr.bf16.mxu0 0
      %302 = vmatpush1.bf16.msra.mxu0 0
      %303 = vmatprep.subr.bf16.mxu0 0
      %304 = vmatpush1.bf16.msra.mxu0 0
      %305 = vmatprep.subr.bf16.mxu0 0
      %306 = vmatpush1.bf16.msra.mxu0 %v289
      %307 = vmatprep.subr.bf16.mxu0 0
      %308 = vmatpush2.bf16.msra.mxu0 0
      %309 = vmatprep.subr.bf16.mxu0 0
      %310 = vmatpush2.bf16.msra.mxu0 0
      %311 = vmatprep.subr.bf16.mxu0 0
      %312 = vmatpush2.bf16.msra.mxu0 0
      %313 = vmatprep.subr.bf16.mxu0 0
      %314 = vmatpush2.bf16.msra.mxu0 0
      %315 = vmatprep.subr.bf16.mxu0 0
      %316 = vmatpush2.bf16.msra.mxu0 0
      %317 = vmatprep.subr.bf16.mxu0 0
      %318 = vmatpush2.bf16.msra.mxu0 0
      %319 = vmatprep.subr.bf16.mxu0 0
      %320 = vmatpush2.bf16.msra.mxu0 0
      %321 = vmatprep.subr.bf16.mxu0 0
      %322 = vmatpush2.bf16.msra.mxu0 0
      %323 = vmatprep.mubr.bf16.mxu0 0
      %324 = vmatmul.mubr.bf16.gmra.mxu0 %v264
      %v325 = vpop.f32.mrf.mxu0
      %v326 = vadd.f32 0.0, %v325
      %v327 = vpop.f32.mrf.mxu0
      %v328 = vpop.f32.mrf.mxu0
      %v329 = vadd.f32 0.0, %v328
      %v330 = vpop.f32.mrf.mxu0
      %331 = vmatprep.mubr.bf16.mxu0 0
      %332 = vmatmul.mubr.bf16.gmra.mxu0 %v267
      %v333 = vpop.f32.mrf.mxu0
      %v334 = vadd.f32 0.0, %v333
      %v335 = vpop.f32.mrf.mxu0
      %v336 = vpop.f32.mrf.mxu0
      %v337 = vadd.f32 0.0, %v336
      %v338 = vpop.f32.mrf.mxu0
      %339 = vmatprep.mubr.bf16.mxu0 0
      %340 = vmatmul.mubr.bf16.gmra.mxu0 %v270
      %v341 = vpop.f32.mrf.mxu0
      %v342 = vadd.f32 0.0, %v341
      %v343 = vpop.f32.mrf.mxu0
      %v344 = vpop.f32.mrf.mxu0
      %v345 = vadd.f32 0.0, %v344
      %v346 = vpop.f32.mrf.mxu0
      %347 = vmatprep.mubr.bf16.mxu0 0
      %348 = vmatmul.mubr.bf16.gmra.mxu0 %v273
      %v349 = vpop.f32.mrf.mxu0
      %v350 = vadd.f32 0.0, %v349
      %v351 = vpop.f32.mrf.mxu0
      %v352 = vpop.f32.mrf.mxu0
      %v353 = vadd.f32 0.0, %v352
      %v354 = vpop.f32.mrf.mxu0
      %355 = vmatprep.mubr.bf16.mxu0 0
      %356 = vmatmul.mubr.bf16.gmra.mxu0 %v276
      %v357 = vpop.f32.mrf.mxu0
      %v358 = vadd.f32 0.0, %v357
      %v359 = vpop.f32.mrf.mxu0
      %v360 = vpop.f32.mrf.mxu0
      %v361 = vadd.f32 0.0, %v360
      %v362 = vpop.f32.mrf.mxu0
      %363 = vmatprep.mubr.bf16.mxu0 0
      %364 = vmatmul.mubr.bf16.gmra.mxu0 %v279
      %v365 = vpop.f32.mrf.mxu0
      %v366 = vadd.f32 0.0, %v365
      %v367 = vpop.f32.mrf.mxu0
      %v368 = vpop.f32.mrf.mxu0
      %v369 = vadd.f32 0.0, %v368
      %v370 = vpop.f32.mrf.mxu0
      %371 = vmatprep.mubr.bf16.mxu0 0
      %372 = vmatmul.mubr.bf16.gmra.mxu0 %v282
      %v373 = vpop.f32.mrf.mxu0
      %v374 = vadd.f32 0.0, %v373
      %v375 = vpop.f32.mrf.mxu0
      %v376 = vpop.f32.mrf.mxu0
      %v377 = vadd.f32 0.0, %v376
      %v378 = vpop.f32.mrf.mxu0
      %379 = vmatprep.mubr.bf16.mxu0 0
      %380 = vmatmul.mubr.bf16.gmra.mxu0 %v285
      %v381 = vpop.f32.mrf.mxu0
      %v382 = vadd.f32 0.0, %v381
      %v383 = vpop.f32.mrf.mxu0
      %v384 = vpop.f32.mrf.mxu0
      %v385 = vadd.f32 0.0, %v384
      %v386 = vpop.f32.mrf.mxu0
      %387 = vdwg.mxu0
      %v388 = vpack.c.bf16 %v329, %v326
      %v389 = vpack.c.bf16 %v337, %v334
      %v390 = vpack.c.bf16 %v345, %v342
      %v391 = vpack.c.bf16 %v353, %v350
      %v392 = vpack.c.bf16 %v361, %v358
      %v393 = vpack.c.bf16 %v369, %v366
      %v394 = vpack.c.bf16 %v377, %v374
      %v395 = vpack.c.bf16 %v385, %v382
      %v404 = vunpack.c.l.b16 %v388
      %v405 = vunpack.c.h.b16 %v388
      %v406 = vunpack.c.l.b16 %v389
      %v407 = vunpack.c.h.b16 %v389
      %v408 = vunpack.c.l.b16 %v390
      %v409 = vunpack.c.h.b16 %v390
      %v410 = vunpack.c.l.b16 %v391
      %v411 = vunpack.c.h.b16 %v391
      %v412 = vunpack.c.l.b16 %v392
      %v413 = vunpack.c.h.b16 %v392
      %v414 = vunpack.c.l.b16 %v393
      %v415 = vunpack.c.h.b16 %v393
      %v416 = vunpack.c.l.b16 %v394
      %v417 = vunpack.c.h.b16 %v394
      %v418 = vunpack.c.l.b16 %v395
      %v419 = vunpack.c.h.b16 %v395
      %v420 = vpack.c.b16 %v404, %v404
      %v421 = vpack.c.b16 %v405, %v405
      %v422 = vpack.c.b16 %v406, %v406
      %v423 = vpack.c.b16 %v407, %v407
      %v424 = vpack.c.b16 %v408, %v408
      %v425 = vpack.c.b16 %v409, %v409
      %v426 = vpack.c.b16 %v410, %v410
      %v427 = vpack.c.b16 %v411, %v411
      %v428 = vpack.c.b16 %v412, %v412
      %v429 = vpack.c.b16 %v413, %v413
      %v430 = vpack.c.b16 %v414, %v414
      %v431 = vpack.c.b16 %v415, %v415
      %v432 = vpack.c.b16 %v416, %v416
      %v433 = vpack.c.b16 %v417, %v417
      %v434 = vpack.c.b16 %v418, %v418
      %v435 = vpack.c.b16 %v419, %v419
      %vm452 = vcmask 27648
      %453 = vst.msk [vmem:[%s226] sm:$0xf] %vm452, %v420
      %454 = vst.msk [vmem:[%s226 + $0x4] sm:$0xf] %vm452, %v421
      %455 = vst.msk [vmem:[%s226 + $0x8] sm:$0xf] %vm452, %v422
      %456 = vst.msk [vmem:[%s226 + $0xc] sm:$0xf] %vm452, %v423
      %457 = vst.msk [vmem:[%s226 + $0x10] sm:$0xf] %vm452, %v424
      %458 = vst.msk [vmem:[%s226 + $0x14] sm:$0xf] %vm452, %v425
      %459 = vst.msk [vmem:[%s226 + $0x18] sm:$0xf] %vm452, %v426
      %460 = vst.msk [vmem:[%s226 + $0x1c] sm:$0xf] %vm452, %v427
      %461 = vst.msk [vmem:[%s226 + $0x20] sm:$0xf] %vm452, %v428
      %462 = vst.msk [vmem:[%s226 + $0x24] sm:$0xf] %vm452, %v429
      %463 = vst.msk [vmem:[%s226 + $0x28] sm:$0xf] %vm452, %v430
      %464 = vst.msk [vmem:[%s226 + $0x2c] sm:$0xf] %vm452, %v431
      %465 = vst.msk [vmem:[%s226 + $0x30] sm:$0xf] %vm452, %v432
      %466 = vst.msk [vmem:[%s226 + $0x34] sm:$0xf] %vm452, %v433
      %467 = vst.msk [vmem:[%s226 + $0x38] sm:$0xf] %vm452, %v434
      %468 = vst.msk [vmem:[%s226 + $0x3c] sm:$0xf] %vm452, %v435
      %v469 = vunpack.c.l.bf16 %v388
      %v470 = vunpack.c.h.bf16 %v388
      %v471 = vunpack.c.l.bf16 %v389
      %v472 = vunpack.c.h.bf16 %v389
      %v473 = vunpack.c.l.bf16 %v390
      %v474 = vunpack.c.h.bf16 %v390
      %v475 = vunpack.c.l.bf16 %v391
      %v476 = vunpack.c.h.bf16 %v391
      %v477 = vunpack.c.l.bf16 %v392
      %v478 = vunpack.c.h.bf16 %v392
      %v479 = vunpack.c.l.bf16 %v393
      %v480 = vunpack.c.h.bf16 %v393
      %v481 = vunpack.c.l.bf16 %v394
      %v482 = vunpack.c.h.bf16 %v394
      %v483 = vunpack.c.l.bf16 %v395
      %v484 = vunpack.c.h.bf16 %v395
      %v485 = vsel %vm262, %v469, 0.0
      %v486 = vsel %vm262, %v470, 0.0
      %v487 = vadd.f32 %v485, %v486
      %v488 = vsel %vm262, %v471, 0.0
      %v489 = vadd.f32 %v487, %v488
      %v490 = vsel %vm262, %v472, 0.0
      %v491 = vadd.f32 %v489, %v490
      %v492 = vsel %vm262, %v473, 0.0
      %v493 = vadd.f32 %v491, %v492
      %v494 = vsel %vm262, %v474, 0.0
      %v495 = vadd.f32 %v493, %v494
      %v496 = vsel %vm262, %v475, 0.0
      %v497 = vadd.f32 %v495, %v496
      %v498 = vsel %vm262, %v476, 0.0
      %v499 = vadd.f32 %v497, %v498
      %v500 = vsel %vm262, %v477, 0.0
      %v501 = vadd.f32 %v499, %v500
      %v502 = vsel %vm262, %v478, 0.0
      %v503 = vadd.f32 %v501, %v502
      %v504 = vsel %vm262, %v479, 0.0
      %v505 = vadd.f32 %v503, %v504
      %v506 = vsel %vm262, %v480, 0.0
      %v507 = vadd.f32 %v505, %v506
      %v508 = vsel %vm262, %v481, 0.0
      %v509 = vadd.f32 %v507, %v508
      %v510 = vsel %vm262, %v482, 0.0
      %v511 = vadd.f32 %v509, %v510
      %v512 = vsel %vm262, %v483, 0.0
      %v513 = vadd.f32 %v511, %v512
      %v514 = vsel %vm262, %v484, 0.0
      %v515 = vadd.f32 %v513, %v514
      %v516 = vrot.slane %v515, 4
      %v517 = vadd.f32 %v515, %v516
      %v518 = vrot.slane %v517, 2
      %v519 = vadd.f32 %v517, %v518
      %v520 = vrot.slane %v519, 1
      %v521 = vadd.f32 %v519, %v520
      %vm522 = vcmask 24576
      %523 = vst.msk [vmem:[%s233] sm:$0x1] %vm522, %v521
      %v524 = vmul.f32 %v469, %v469
      %v525 = vmul.f32 %v470, %v470
      %v526 = vmul.f32 %v471, %v471
      %v527 = vmul.f32 %v472, %v472
      %v528 = vmul.f32 %v473, %v473
      %v529 = vmul.f32 %v474, %v474
      %v530 = vmul.f32 %v475, %v475
      %v531 = vmul.f32 %v476, %v476
      %v532 = vmul.f32 %v477, %v477
      %v533 = vmul.f32 %v478, %v478
      %v534 = vmul.f32 %v479, %v479
      %v535 = vmul.f32 %v480, %v480
      %v536 = vmul.f32 %v481, %v481
      %v537 = vmul.f32 %v482, %v482
      %v538 = vmul.f32 %v483, %v483
      %v539 = vmul.f32 %v484, %v484
      %v540 = vsel %vm262, %v524, 0.0
      %v541 = vsel %vm262, %v525, 0.0
      %v542 = vadd.f32 %v540, %v541
      %v543 = vsel %vm262, %v526, 0.0
      %v544 = vadd.f32 %v542, %v543
      %v545 = vsel %vm262, %v527, 0.0
      %v546 = vadd.f32 %v544, %v545
      %v547 = vsel %vm262, %v528, 0.0
      %v548 = vadd.f32 %v546, %v547
      %v549 = vsel %vm262, %v529, 0.0
      %v550 = vadd.f32 %v548, %v549
      %v551 = vsel %vm262, %v530, 0.0
      %v552 = vadd.f32 %v550, %v551
      %v553 = vsel %vm262, %v531, 0.0
      %v554 = vadd.f32 %v552, %v553
      %v555 = vsel %vm262, %v532, 0.0
      %v556 = vadd.f32 %v554, %v555
      %v557 = vsel %vm262, %v533, 0.0
      %v558 = vadd.f32 %v556, %v557
      %v559 = vsel %vm262, %v534, 0.0
      %v560 = vadd.f32 %v558, %v559
      %v561 = vsel %vm262, %v535, 0.0
      %v562 = vadd.f32 %v560, %v561
      %v563 = vsel %vm262, %v536, 0.0
      %v564 = vadd.f32 %v562, %v563
      %v565 = vsel %vm262, %v537, 0.0
      %v566 = vadd.f32 %v564, %v565
      %v567 = vsel %vm262, %v538, 0.0
      %v568 = vadd.f32 %v566, %v567
      %v569 = vsel %vm262, %v539, 0.0
      %v570 = vadd.f32 %v568, %v569
      %v571 = vrot.slane %v570, 4
      %v572 = vadd.f32 %v570, %v571
      %v573 = vrot.slane %v572, 2
      %v574 = vadd.f32 %v572, %v573
      %v575 = vrot.slane %v574, 1
      %v576 = vadd.f32 %v574, %v575
      %577 = vst.msk [vmem:[%s233 + $0x1] sm:$0x1] %vm522, %v576
      %s578 = smul.u32 8, %s20
      %p579 = scmp.lt.s32.totalorder %s19, 1
      %s580 = scalar_select %p579, %s19, 1
      %p581 = scmp.lt.s32.totalorder %s578, 15
      %s582 = scalar_select %p581, %s578, 15
      %s583 = smul.addr %s582, 2
      %s584 = smul.addr %s580, 32
      %s585 = sadd.s32 %s583, %s584
      %s586 = smul.addr %s585, 4
      %s587 = scalar_lea.vmem %s2, %s586
      %s588 = smul.u32 %s19, 2
      %s589 = sadd.s32 %s588, %s20
      %p590 = scmp.lt.s32.totalorder %s589, 3
      %s591 = scalar_select %p590, %s589, 3
      %s592 = smul.addr %s591, 8
      %s593 = scalar_lea.vmem %s3, %s592
      // Predicated region
      $region29: #{tpu_custom_call.1} parent=27 // pred_check
        %p594 = pneg %p96
      $region30: #{tpu_custom_call.1} parent=27 // pred_check_branch
        %596 = sbr.rel (%p594) target = $region32
      $region31: #{tpu_custom_call.1} parent=27 // pred_region
        %s597 = smul.u32 8, %s20
      $region32: #{tpu_custom_call.1} parent=27 // pred_fallthru
        _
      // Predicated region
      $region33: #{tpu_custom_call.1} parent=27 // pred_check
        %p598 = pneg %p126
      $region34: #{tpu_custom_call.1} parent=27 // pred_check_branch
        %600 = sbr.rel (%p598) target = $region36
      $region35: #{tpu_custom_call.1} parent=27 // pred_region
        %s601 = smul.u32 %s19, 2
        %s602 = sadd.s32 %s601, %s20
      $region36: #{tpu_custom_call.1} parent=27 // pred_fallthru
        _
    $region28: #{tpu_custom_call.1} parent=5 // pred_fallthru
      _
    %p603 = scmp.le.s32.totalorder 2, %s10
    // Predicated region
    $region37: #{tpu_custom_call.1} parent=5 // pred_check
      %p604 = pneg %p603
    $region38: #{tpu_custom_call.1} parent=5 // pred_check_branch
      %606 = sbr.rel (%p604) target = $region40
    $region39: #{tpu_custom_call.1} parent=5 // pred_region
      %s607 = ssub.s32 %s10, 2
      // Predicated region
      $region41: #{tpu_custom_call.1} parent=39 // pred_check
        %p608 = pneg %p102
      $region42: #{tpu_custom_call.1} parent=39 // pred_check_branch
        %610 = sbr.rel (%p608) target = $region44
      $region43: #{tpu_custom_call.1} parent=39 // pred_region
        %s611 = smul.u32 8, %s22
        %p612 = scmp.lt.s32.totalorder %s21, 1
        %s613 = scalar_select %p612, %s21, 1
        %p614 = scmp.lt.s32.totalorder %s611, 15
        %s615 = scalar_select %p614, %s611, 15
        %s616 = smul.addr %s615, 2
        %s617 = smul.addr %s613, 32
        %s618 = sadd.s32 %s616, %s617
        %s619 = smul.addr %s618, 4
        %s620 = scalar_lea.vmem %s2, %s619
      $region44: #{tpu_custom_call.1} parent=39 // pred_fallthru
        _
      // Predicated region
      $region45: #{tpu_custom_call.1} parent=39 // pred_check
        %p621 = pneg %p132
      $region46: #{tpu_custom_call.1} parent=39 // pred_check_branch
        %623 = sbr.rel (%p621) target = $region48
      $region47: #{tpu_custom_call.1} parent=39 // pred_region
        %s624 = smul.u32 %s21, 2
        %s625 = sadd.s32 %s624, %s22
        %p626 = scmp.lt.s32.totalorder %s625, 3
        %s627 = scalar_select %p626, %s625, 3
        %s628 = smul.addr %s627, 8
        %s629 = scalar_lea.vmem %s3, %s628
      $region48: #{tpu_custom_call.1} parent=39 // pred_fallthru
        _
    $region40: #{tpu_custom_call.1} parent=5 // pred_fallthru
      _
  $region6: #{tpu_custom_call.1} parent=0 // loop_footer
    %s14 = sadd.s32 1, %s10
  $region7: #{tpu_custom_call.1} parent=0 // loop_footer_branch
    %9 = sbr.rel target = $region3
  $region8: #{tpu_custom_call.1} parent=0 // loop_exit
    _

</llo_original>
